<compile_context>
chip_gen: v6e
topology: v6e:2x2x1
jax: 0.10.0
libtpu: 0.0.40
codegen_flags: <defaults>
</compile_context>

<pallas_src>
import functools
import math

import jax
import jax.numpy as jnp
import numpy as np
from jax.experimental import pallas as pl
from jax.experimental.pallas import tpu as pltpu


# ---------------------------------------------------------------------------
# Parameter (buffer) construction -- mirrors PositionalEncoding.__init__
# ---------------------------------------------------------------------------
def make_positional_encoding(d_model: int, max_len: int = 5000,
                             dtype=jnp.float32) -> jnp.ndarray:
    """Returns pe of shape (max_len, d_model), identical to the torch buffer."""
    position = jnp.arange(max_len, dtype=jnp.float32)[:, None]            # (L, 1)
    div_term = jnp.exp(jnp.arange(0, d_model, 2, dtype=jnp.float32)
                       * (-math.log(10000.0) / d_model))                  # (D/2,)
    pe = jnp.zeros((max_len, d_model), dtype=jnp.float32)
    pe = pe.at[:, 0::2].set(jnp.sin(position * div_term))
    pe = pe.at[:, 1::2].set(jnp.cos(position * div_term))
    return pe.astype(dtype)


# ---------------------------------------------------------------------------
# Kernels
# ---------------------------------------------------------------------------
def _pe_add_kernel(x_ref, pe_ref, o_ref):
    # eval mode: out = x + pe  (dropout is identity).  Blocks:
    #   x/o: (B, chunk)   pe: (1, chunk)  -> broadcast over batch rows.
    o_ref[...] = x_ref[...] + pe_ref[...]


def _hash_u32(x):
    # murmur3 finalizer -- good avalanche, pure VPU integer ops.
    x = x ^ (x >> jnp.uint32(16))
    x = x * jnp.uint32(0x85EBCA6B)
    x = x ^ (x >> jnp.uint32(13))
    x = x * jnp.uint32(0xC2B2AE35)
    x = x ^ (x >> jnp.uint32(16))
    return x


def _pe_add_dropout_kernel(seed_ref, x_ref, pe_ref, o_ref, *, p, chunk, row_len):
    # training mode: out = dropout(x + pe, p) with inverted-dropout scaling.
    c = pl.program_id(0)

    y = x_ref[...].astype(jnp.float32) + pe_ref[...].astype(jnp.float32)

    # Global flat element index (row = batch, col = position within S*D row).
    # TODO(synk): int32 index math overflows past 2^31 total elements.
    rows = jax.lax.broadcasted_iota(jnp.int32, y.shape, 0)
    cols = jax.lax.broadcasted_iota(jnp.int32, y.shape, 1)
    gidx = (rows * row_len + cols + c * chunk).astype(jnp.uint32)

    seed = seed_ref[0].astype(jnp.uint32)
    bits = _hash_u32(gidx + seed * jnp.uint32(0x9E3779B1))

    # Integer threshold test: drop iff top-31 bits < p * 2^31.
    r31 = (bits >> jnp.uint32(1)).astype(jnp.int32)            # in [0, 2^31)
    thresh = jnp.int32(min(int(p * (1 << 31)), (1 << 31) - 1))
    keep = r31 >= thresh

    scale = jnp.float32(1.0 / (1.0 - p))
    o_ref[...] = jnp.where(keep, y * scale, jnp.float32(0.0)).astype(o_ref.dtype)


# ---------------------------------------------------------------------------
# Wrapper
# ---------------------------------------------------------------------------
def _pick_chunk(total: int, cap_elems: int) -> int:
    """Largest divisor of `total` that is a multiple of 128 and <= cap_elems."""
    m = min(total, cap_elems)
    m -= m % 128
    for c in range(m, 0, -128):
        if total % c == 0:
            return c
    return total   # no lane-aligned divisor; fall back to full row (still legal)


def positional_encoding_forward(x: jnp.ndarray,
                                pe_full: jnp.ndarray,
                                *,
                                dropout_p: float = 0.1,
                                training: bool = False,
                                seed: int = 0) -> jnp.ndarray:
    """x: (B, S, D); pe_full: (max_len, D). Returns (B, S, D)."""
    B, S, D = x.shape
    pe = pe_full[:S, :].astype(x.dtype)                        # (S, D), x dtype

    # Lane-dense flattening: rows are batches, columns are the S*D flattened
    # token/feature axis -> last block dim is a large multiple of 128.
    row = S * D
    x2 = x.reshape(B, row)
    pe2 = pe.reshape(1, row)

    # Per-block footprint cap ~1 MiB f32 (x2 block); 2x(x)+2x(pe)+2x(out)
    # double-buffered stays well under 16 MiB (v5e) / 32 MiB (v6e/v7x) scoped
    # VMEM defaults and v7x's 64 MiB physical VMEM.
    cap = max(128, (256 * 1024) // max(B, 1))
    chunk = _pick_chunk(row, cap)
    n_chunks = row // chunk

    itemsize = jnp.dtype(x.dtype).itemsize
    cost = pl.CostEstimate(flops=B * row, transcendentals=0,
                           bytes_accessed=(2 * B * row + row) * itemsize)
    cparams = pltpu.CompilerParams(
        dimension_semantics=("parallel",),          # megacore-shard chunks (v7x)
        vmem_limit_bytes=32 * 1024 * 1024)

    if (not training) or dropout_p == 0.0:
        out2 = pl.pallas_call(
            _pe_add_kernel,
            out_shape=jax.ShapeDtypeStruct((B, row), x.dtype),
            grid_spec=pltpu.PrefetchScalarGridSpec(
                num_scalar_prefetch=0,
                grid=(n_chunks,),
                in_specs=[
                    pl.BlockSpec((B, chunk), lambda c: (0, c)),
                    pl.BlockSpec((1, chunk), lambda c: (0, c)),
                ],
                out_specs=pl.BlockSpec((B, chunk), lambda c: (0, c)),
            ),
            compiler_params=cparams,
            cost_estimate=cost,
        )(x2, pe2)
        return out2.reshape(B, S, D)

    seed_arr = jnp.array([seed], dtype=jnp.int32)
    kernel = functools.partial(_pe_add_dropout_kernel,
                               p=float(dropout_p), chunk=chunk, row_len=row)
    out2 = pl.pallas_call(
        kernel,
        out_shape=jax.ShapeDtypeStruct((B, row), x.dtype),
        grid_spec=pltpu.PrefetchScalarGridSpec(
            num_scalar_prefetch=1,
            grid=(n_chunks,),
            in_specs=[
                pl.BlockSpec((B, chunk), lambda c, seed: (0, c)),
                pl.BlockSpec((1, chunk), lambda c, seed: (0, c)),
            ],
            out_specs=pl.BlockSpec((B, chunk), lambda c, seed: (0, c)),
        ),
        compiler_params=cparams,
        cost_estimate=cost,
    )(seed_arr, x2, pe2)
    return out2.reshape(B, S, D)


# ---------------------------------------------------------------------------
# Main
# ---------------------------------------------------------------------------
if __name__ == "__main__":
    B, S, D = 2, 8, 32          # batch, seq_length, d_model
    MAX_LEN = 64
    DROPOUT_P = 0.1

    key = jax.random.PRNGKey(0)
    x = jax.random.normal(key, (B, S, D), dtype=jnp.float32)

    pe_full = make_positional_encoding(D, max_len=MAX_LEN)

    # --- eval mode (dropout = identity): check against pure-JAX reference ---
    out_eval = positional_encoding_forward(x, pe_full, dropout_p=DROPOUT_P,
                                           training=False)
    out_eval = jax.block_until_ready(out_eval)
    ref = x + pe_full[None, :S, :]
    np.testing.assert_allclose(np.asarray(out_eval), np.asarray(ref),
                               rtol=1e-6, atol=1e-6)

    # --- training mode (in-kernel stateless-hash dropout) ---
    out_train = positional_encoding_forward(x, pe_full, dropout_p=DROPOUT_P,
                                            training=True, seed=123)
    out_train = jax.block_until_ready(out_train)
    assert out_train.shape == (B, S, D)
    ot = np.asarray(out_train)
    refn = np.asarray(ref)
    kept = ot != 0.0
    # kept positions equal ref / (1-p); dropped are exactly zero
    np.testing.assert_allclose(ot[kept], (refn / (1.0 - DROPOUT_P))[kept],
                               rtol=1e-5, atol=1e-5)
    n_drop = int((~kept).sum())
    assert 0 < n_drop < ot.size, f"implausible drop count {n_drop}/{ot.size}"

    # determinism: same seed -> same mask
    out_train2 = jax.block_until_ready(
        positional_encoding_forward(x, pe_full, dropout_p=DROPOUT_P,
                                    training=True, seed=123))
    np.testing.assert_array_equal(np.asarray(out_train2), ot)

    print("KERNEL_OK")
</pallas_src>

<mosaic_0001>
module attributes {stable_mosaic.version = 11 : i64} {
  func.func @_pe_add_kernel(%arg0: i32, %arg1: memref<2x256xf32, #tpu.memory_space<vmem>>, %arg2: memref<1x256xf32, #tpu.memory_space<vmem>>, %arg3: memref<2x256xf32, #tpu.memory_space<vmem>>) attributes {dimension_semantics = [#tpu.dimension_semantics<parallel>], iteration_bounds = array<i64: 1>, scalar_prefetch = 0 : i64, scratch_operands = 0 : i64, tpu.core_type = #tpu.core_type<tc>, window_params = [{transform_indices = @transform_0, window_bounds = array<i64: 2, 256>}, {transform_indices = @transform_1, window_bounds = array<i64: 1, 256>}, {transform_indices = @transform_2, window_bounds = array<i64: 2, 256>}]} {
    %c0 = arith.constant 0 : index
    %c0_0 = arith.constant 0 : index
    %0 = vector.load %arg1[%c0, %c0_0] : memref<2x256xf32, #tpu.memory_space<vmem>>, vector<2x256xf32>
    %c0_1 = arith.constant 0 : index
    %c0_2 = arith.constant 0 : index
    %1 = vector.load %arg2[%c0_1, %c0_2] : memref<1x256xf32, #tpu.memory_space<vmem>>, vector<1x256xf32>
    %2 = vector.broadcast %1 : vector<1x256xf32> to vector<2x256xf32>
    %3 = arith.addf %0, %2 : vector<2x256xf32>
    %c0_3 = arith.constant 0 : index
    %c0_4 = arith.constant 0 : index
    %4 = vector.load %arg3[%c0_3, %c0_4] : memref<2x256xf32, #tpu.memory_space<vmem>>, vector<2x256xf32>
    tpu.vector_store %arg3[%c0_3, %c0_4], %3 {strides = array<i32>} : memref<2x256xf32, #tpu.memory_space<vmem>>, vector<2x256xf32>,
    return
  }
  func.func @transform_0(%arg0: i32) -> (i32, i32) {
    %c0_i32 = arith.constant 0 : i32
    %c0_i32_0 = arith.constant 0 : i32
    return %c0_i32, %arg0 : i32, i32
  }
  func.func @transform_1(%arg0: i32) -> (i32, i32) {
    %c0_i32 = arith.constant 0 : i32
    %c0_i32_0 = arith.constant 0 : i32
    return %c0_i32, %arg0 : i32, i32
  }
  func.func @transform_2(%arg0: i32) -> (i32, i32) {
    %c0_i32 = arith.constant 0 : i32
    %c0_i32_0 = arith.constant 0 : i32
    return %c0_i32, %arg0 : i32, i32
  }
}

</mosaic_0001>

<llo_original>
// kernel: tpu_custom_call.1
$region0: #{tpu_custom_call.1}
  #allocation0 [shape = 'u32[]', space=smem, size = 0x4, offset = 0x4, fixed_abs, tag = 'smem constant byte address 0x4 - core index']
  #allocation1 [shape = 'u32[144,128]{1,0:T(1,128)}', space=vmem, size = 0x12000, scoped, tag = 'internal scratch']
  %s0 = inlined_call_operand.hbm [shape: f32[2,256], index: 0, kind: input, shape index: {}]
  %s1 = inlined_call_operand.hbm [shape: f32[1,256], index: 1, kind: input, shape index: {}]
  %s2 = inlined_call_operand.hbm [shape: f32[2,256], index: 2, kind: output, shape index: {}]
  %s3 = sld [smem:[#allocation0]]
  $region26: #{tpu_custom_call.1} parent=0
    _
  %s5 = ssub.s32 1, %s3
  %s6 = scalar_select 0, %s5, %s3
  $region1: #{tpu_custom_call.1} parent=0
    #allocation2 [shape = 'u8[2048]{0}', space=vmem, size = 0x800, scoped, tag = 'input window, operand 0, single buffered']
    #allocation3 [shape = 's32[1]{0}', space=sflag, size = 0x4, scoped, tag = 'scoped memory for tpu_custom_call.1']
    #allocation4 [shape = 's32[1]{0}', space=sflag, size = 0x4, scoped, tag = 'scoped memory for tpu_custom_call.1']
    #allocation5 [shape = 'u8[1024]{0}', space=vmem, size = 0x400, scoped, tag = 'input window, operand 1, single buffered']
    #allocation6 [shape = 's32[1]{0}', space=sflag, size = 0x4, scoped, tag = 'scoped memory for tpu_custom_call.1']
    #allocation7 [shape = 'u8[2048]{0}', space=vmem, size = 0x800, scoped, tag = 'output window, operand 0, single buffered']
    %7 = vsyncpa [#allocation3], 0
    %8 = vsyncpa [#allocation6], 0
    %9 = vsyncpa [#allocation4], 0
    // Predicated region
    $region2: #{tpu_custom_call.1} parent=1 // pred_check
      _
    $region3: #{tpu_custom_call.1} parent=1 // pred_check_branch
      %11 = sbr.rel (0) target = $region5
    $region4: #{tpu_custom_call.1} parent=1 // pred_region
      %s13 = ssub.s32 64, 64
      %14 = vsyncadd [#allocation3], %s13
      %s16 = sshll.u32 [#allocation2], 4
      %s17 = int_to_ptr.vmem [resolvable:$true] %s16
      %19 = dma.hbm_to_vmem [thread:$0]  %s0, 64, %s17, [#allocation3]
    $region5: #{tpu_custom_call.1} parent=1 // pred_fallthru
      _
    // Predicated region
    $region6: #{tpu_custom_call.1} parent=1 // pred_check
      _
    $region7: #{tpu_custom_call.1} parent=1 // pred_check_branch
      %21 = sbr.rel (0) target = $region9
    $region8: #{tpu_custom_call.1} parent=1 // pred_region
      %s23 = ssub.s32 32, 32
      %24 = vsyncadd [#allocation6], %s23
      %s26 = sshll.u32 [#allocation5], 4
      %s27 = int_to_ptr.vmem [resolvable:$true] %s26
      %29 = dma.hbm_to_vmem [thread:$0]  %s1, 32, %s27, [#allocation6]
    $region9: #{tpu_custom_call.1} parent=1 // pred_fallthru
      _
    // Predicated region
    $region10: #{tpu_custom_call.1} parent=1 // pred_check
      _
    $region11: #{tpu_custom_call.1} parent=1 // pred_check_branch
      %31 = sbr.rel (0) target = $region13
    $region12: #{tpu_custom_call.1} parent=1 // pred_region
      %32 = dma.done [#allocation3], 64
    $region13: #{tpu_custom_call.1} parent=1 // pred_fallthru
      _
    // Predicated region
    $region14: #{tpu_custom_call.1} parent=1 // pred_check
      _
    $region15: #{tpu_custom_call.1} parent=1 // pred_check_branch
      %34 = sbr.rel (0) target = $region17
    $region16: #{tpu_custom_call.1} parent=1 // pred_region
      %35 = dma.done [#allocation6], 32
    $region17: #{tpu_custom_call.1} parent=1 // pred_fallthru
      _
    %v36 = vld [vmem:[#allocation2] sm:$0xf]
    %v37 = vld [vmem:[#allocation5] sm:$0x3]
    %v39 = vlaneseq
    %v40 = vshrl.u32 %v39, 7
    %v41 = vsub.s32 0, %v40
    %v42 = vrot.slane %v37, %v41
    %v43 = vlaneseq
    %v44 = vshrl.u32 %v43, 7
    %v45 = vsub.s32 1, %v44
    %v46 = vrot.slane %v37, %v45
    %v47 = vcombine.low %v42, %v46
    %v49 = vunpack.c.l.s4 1983009808
    %v50 = vunpack.c.0.s8 %v49
    %v51 = vlaneseq
    %v52 = vshrl.u32 %v51, 7
    %v53 = vsub.s32 %v50, %v52
    %v54 = vrot.slane %v47, %v53
    %v56 = vadd.f32 %v36, %v54
    %57 = vst [vmem:[#allocation7] sm:$0xf] %v56
    // Predicated region
    $region18: #{tpu_custom_call.1} parent=1 // pred_check
      _
    $region19: #{tpu_custom_call.1} parent=1 // pred_check_branch
      %59 = sbr.rel (0) target = $region21
    $region20: #{tpu_custom_call.1} parent=1 // pred_region
      %s61 = ssub.s32 64, 64
      %62 = vsyncadd [#allocation4], %s61
      %s64 = sshll.u32 [#allocation7], 4
      %s65 = int_to_ptr.vmem [resolvable:$true] %s64
      %67 = dma.vmem_to_hbm [thread:$0]  %s65, 64, %s2, [#allocation4]
    $region21: #{tpu_custom_call.1} parent=1 // pred_fallthru
      _
    // Predicated region
    $region22: #{tpu_custom_call.1} parent=1 // pred_check
      _
    $region23: #{tpu_custom_call.1} parent=1 // pred_check_branch
      %69 = sbr.rel (0) target = $region25
    $region24: #{tpu_custom_call.1} parent=1 // pred_region
      %70 = dma.done [#allocation4], 64
    $region25: #{tpu_custom_call.1} parent=1 // pred_fallthru
      _
    %71 = vsyncpa [#allocation3], 1
    %72 = vsyncpa [#allocation6], 1
    %73 = vsyncpa [#allocation4], 1

</llo_original>
